<compile_context>
chip_gen: v7x
topology: tpu7x:2x2x1
jax: 0.10.0
libtpu: 0.0.40
codegen_flags: <defaults>
</compile_context>

<pallas_src>
import functools

import jax
import jax.numpy as jnp
from jax.experimental import pallas as pl
from jax.experimental.pallas import tpu as pltpu

EPS = 1e-5
OUT_DIM = 5
OUT_PAD = 128  # lane-dense padded output width


def _make_dln_kernel(bf16_matmul: bool):
    mm_dtype = jnp.bfloat16 if bf16_matmul else jnp.float32

    def dln_kernel(x_ref,
                   w1_ref, w2_ref, w3_ref, w4_ref,
                   w5_ref, b5_ref,
                   gamma_ref, beta_ref,
                   o_ref):
        """Forward pass for one minibatch tile resident in VMEM."""
        x = x_ref[...]                      # (TB, 60), f32
        inv_b = 1.0 / x.shape[0]            # static python constant

        def mm(a, w_ref):
            # MXU matmul; f32 accumulate always.
            return jnp.dot(a.astype(mm_dtype), w_ref[...].astype(mm_dtype),
                           preferred_element_type=jnp.float32)

        def bn_relu(h, k):
            # torch F.batch_norm(training=True): batch mean, biased batch var.
            # One fused pass over h for both statistics (f32).
            s1 = jnp.sum(h, axis=0, keepdims=True)
            s2 = jnp.sum(h * h, axis=0, keepdims=True)
            mean = s1 * inv_b
            var = jnp.maximum(s2 * inv_b - mean * mean, 0.0)
            g = gamma_ref[k:k + 1, :]
            b = beta_ref[k:k + 1, :]
            hn = (h - mean) * jax.lax.rsqrt(var + EPS) * g + b
            return jnp.maximum(hn, 0.0)     # F.relu

        # b1..b4 are omitted: BN's mean subtraction cancels them exactly.
        h = bn_relu(mm(x, w1_ref), 0)
        h = bn_relu(mm(h, w2_ref), 1)
        h = bn_relu(mm(h, w3_ref), 2)
        h = bn_relu(mm(h, w4_ref), 3)

        # fc5 padded to 128 lanes; padded columns carry bias = -1e30 so their
        # softmax probability is exactly 0.
        logits = mm(h, w5_ref) + b5_ref[...]          # (TB, 128)

        # softmax over the feature axis
        m = jnp.max(logits, axis=1, keepdims=True)
        e = jnp.exp(logits - m)
        denom = jnp.sum(e, axis=1, keepdims=True)
        o_ref[...] = e * pl.reciprocal(denom, approx=True)

    return dln_kernel


def dln_forward(xb, params, *, bf16_matmul: bool = False):
    """Run DLN forward.

    xb: either (NB, TB, 60) -- a stack of NB independent minibatches processed
        in one pallas_call (one grid step per minibatch, BN stats per minibatch,
        matching torch training-mode semantics for each minibatch), or
        (B, 60) -- a single minibatch (one grid step, BN over the full batch).
    Returns softmax probabilities with trailing dim 5.
    """
    squeeze = False
    if xb.ndim == 2:
        xb = xb[None]
        squeeze = True
    NB, TB, F = xb.shape

    # Pad fc5 for a lane-dense (128-wide) output slab.
    w5 = params["w5"]
    b5 = params["b5"]
    w5p = jnp.zeros((w5.shape[0], OUT_PAD), jnp.float32).at[:, :OUT_DIM].set(w5)
    b5p = jnp.full((1, OUT_PAD), -1e30, jnp.float32).at[:, :OUT_DIM].set(b5)

    args = (
        xb,
        params["w1"], params["w2"], params["w3"], params["w4"],
        w5p, b5p,
        params["gamma"], params["beta"],
    )

    def const_spec(a):
        # Full-array block, constant index_map -> stays VMEM-resident across
        # the whole grid (no per-step re-DMA of the parameters).
        nd = a.ndim
        return pl.BlockSpec(a.shape, lambda i, _nd=nd: (0,) * _nd)

    in_specs = [pl.BlockSpec((None, TB, F), lambda i: (i, 0, 0))]
    in_specs += [const_spec(a) for a in args[1:]]

    out = pl.pallas_call(
        _make_dln_kernel(bf16_matmul),
        out_shape=jax.ShapeDtypeStruct((NB, TB, OUT_PAD), jnp.float32),
        grid=(NB,),
        in_specs=in_specs,
        out_specs=pl.BlockSpec((None, TB, OUT_PAD), lambda i: (i, 0, 0)),
        compiler_params=pltpu.CompilerParams(
            # independent minibatches -> shard across v7x's 2 TCs; harmless on
            # single-TC v5e/v6e.
            dimension_semantics=("parallel",)),
    )(*args)

    out = out[..., :OUT_DIM]      # strip lane padding in the wrapper
    return out[0] if squeeze else out


def dln_reference(xb, params):
    """Pure-JAX torch-semantics reference for one minibatch (B, 60)."""
    def bn_relu(h, k):
        mean = jnp.mean(h, axis=0, keepdims=True)
        var = jnp.mean((h - mean) ** 2, axis=0, keepdims=True)
        hn = ((h - mean) / jnp.sqrt(var + EPS)
              * params["gamma"][k:k + 1] + params["beta"][k:k + 1])
        return jnp.maximum(hn, 0.0)

    h = bn_relu(xb @ params["w1"] + params["b1"], 0)
    h = bn_relu(h @ params["w2"] + params["b2"], 1)
    h = bn_relu(h @ params["w3"] + params["b3"], 2)
    h = bn_relu(h @ params["w4"] + params["b4"], 3)
    logits = h @ params["w5"] + params["b5"]
    return jax.nn.softmax(logits, axis=1)


def init_params(key, in_dim=60, hidden=64, out_dim=OUT_DIM):
    """Deterministic synthetic init (shapes match the torch module)."""
    ks = jax.random.split(key, 10)

    def lin(kw, kb, fan_in, fan_out):
        w = jax.random.normal(kw, (fan_in, fan_out), jnp.float32) * 0.1
        b = jax.random.normal(kb, (1, fan_out), jnp.float32) * 0.01
        return w, b

    w1, b1 = lin(ks[0], ks[1], in_dim, hidden)
    w2, b2 = lin(ks[2], ks[3], hidden, hidden)
    w3, b3 = lin(ks[4], ks[5], hidden, hidden)
    w4, b4 = lin(ks[6], ks[7], hidden, hidden)
    w5, b5 = lin(ks[8], ks[9], hidden, out_dim)
    # Batch-norm affine params exactly as in DLN.__init__: weight=1, bias=0.
    gamma = jnp.ones((4, hidden), jnp.float32)
    beta = jnp.zeros((4, hidden), jnp.float32)
    return dict(w1=w1, b1=b1, w2=w2, b2=b2, w3=w3, b3=b3, w4=w4, b4=b4,
                w5=w5, b5=b5, gamma=gamma, beta=beta)


if __name__ == "__main__":
    key = jax.random.PRNGKey(0)
    k_x, k_p = jax.random.split(key)

    NB, TB = 4, 16                       # 4 independent minibatches of 16 rows
    x = jax.random.normal(k_x, (NB, TB, 60), jnp.float32)  # DLN input dim = 60
    params = init_params(k_p)

    out = jax.block_until_ready(dln_forward(x, params))
    assert out.shape == (NB, TB, OUT_DIM)
    assert out.dtype == jnp.float32

    # Pure-JAX reference (exact torch training-mode semantics, per minibatch).
    ref = jax.block_until_ready(
        jax.vmap(functools.partial(dln_reference, params=params))(x))
    max_err = float(jnp.max(jnp.abs(out - ref)))
    assert max_err < 1e-2, f"mismatch vs reference: {max_err}"
    # softmax rows sum to ~1 (approx reciprocal in the kernel)
    assert jnp.allclose(jnp.sum(out, axis=-1), 1.0, atol=1e-2)

    print("KERNEL_OK")
</pallas_src>

<mosaic_0001>
module attributes {stable_mosaic.version = 11 : i64} {
  func.func @dln_kernel(%arg0: i32, %arg1: memref<1x16x60xf32, #tpu.memory_space<vmem>>, %arg2: memref<60x64xf32, #tpu.memory_space<vmem>>, %arg3: memref<64x64xf32, #tpu.memory_space<vmem>>, %arg4: memref<64x64xf32, #tpu.memory_space<vmem>>, %arg5: memref<64x64xf32, #tpu.memory_space<vmem>>, %arg6: memref<64x128xf32, #tpu.memory_space<vmem>>, %arg7: memref<1x128xf32, #tpu.memory_space<vmem>>, %arg8: memref<4x64xf32, #tpu.memory_space<vmem>>, %arg9: memref<4x64xf32, #tpu.memory_space<vmem>>, %arg10: memref<1x16x128xf32, #tpu.memory_space<vmem>>) attributes {dimension_semantics = [#tpu.dimension_semantics<parallel>], iteration_bounds = array<i64: 4>, scalar_prefetch = 0 : i64, scratch_operands = 0 : i64, tpu.core_type = #tpu.core_type<tc>, window_params = [{transform_indices = @transform_0, window_bounds = array<i64: 1, 16, 60>}, {pipeline_mode = #tpu.pipeline_mode<synchronous>, transform_indices = @transform_1, window_bounds = array<i64: 60, 64>}, {pipeline_mode = #tpu.pipeline_mode<synchronous>, transform_indices = @transform_2, window_bounds = array<i64: 64, 64>}, {pipeline_mode = #tpu.pipeline_mode<synchronous>, transform_indices = @transform_3, window_bounds = array<i64: 64, 64>}, {pipeline_mode = #tpu.pipeline_mode<synchronous>, transform_indices = @transform_4, window_bounds = array<i64: 64, 64>}, {pipeline_mode = #tpu.pipeline_mode<synchronous>, transform_indices = @transform_5, window_bounds = array<i64: 64, 128>}, {pipeline_mode = #tpu.pipeline_mode<synchronous>, transform_indices = @transform_6, window_bounds = array<i64: 1, 128>}, {pipeline_mode = #tpu.pipeline_mode<synchronous>, transform_indices = @transform_7, window_bounds = array<i64: 4, 64>}, {pipeline_mode = #tpu.pipeline_mode<synchronous>, transform_indices = @transform_8, window_bounds = array<i64: 4, 64>}, {transform_indices = @transform_9, window_bounds = array<i64: 1, 16, 128>}]} {
    %c0 = arith.constant 0 : index
    %c0_0 = arith.constant 0 : index
    %c0_1 = arith.constant 0 : index
    %0 = vector.load %arg1[%c0, %c0_0, %c0_1] : memref<1x16x60xf32, #tpu.memory_space<vmem>>, vector<1x16x60xf32>
    %1 = vector.shape_cast %0 : vector<1x16x60xf32> to vector<16x60xf32>
    %c0_2 = arith.constant 0 : index
    %c0_3 = arith.constant 0 : index
    %2 = vector.load %arg2[%c0_2, %c0_3] : memref<60x64xf32, #tpu.memory_space<vmem>>, vector<60x64xf32>
    %cst = arith.constant dense<0.000000e+00> : vector<16x64xf32>
    %3 = tpu.matmul %1, %2, %cst {dimension_numbers = #tpu.dot_dimension_numbers<[1], [0], [0], [1], [0, 0, 1, 1], [], []>} : vector<16x60xf32>, vector<60x64xf32>, vector<16x64xf32> -> vector<16x64xf32>
    %cst_4 = arith.constant dense<0.000000e+00> : vector<64xf32>
    %4 = vector.multi_reduction <add>, %3, %cst_4 [0] : vector<16x64xf32> to vector<64xf32>
    %5 = vector.shape_cast %4 : vector<64xf32> to vector<1x64xf32>
    %6 = arith.mulf %3, %3 : vector<16x64xf32>
    %cst_5 = arith.constant dense<0.000000e+00> : vector<64xf32>
    %7 = vector.multi_reduction <add>, %6, %cst_5 [0] : vector<16x64xf32> to vector<64xf32>
    %8 = vector.shape_cast %7 : vector<64xf32> to vector<1x64xf32>
    %cst_6 = arith.constant 6.250000e-02 : f32
    %9 = vector.broadcast %cst_6 : f32 to vector<1x64xf32>
    %10 = arith.mulf %5, %9 : vector<1x64xf32>
    %cst_7 = arith.constant 6.250000e-02 : f32
    %11 = vector.broadcast %cst_7 : f32 to vector<1x64xf32>
    %12 = arith.mulf %8, %11 : vector<1x64xf32>
    %13 = arith.mulf %10, %10 : vector<1x64xf32>
    %14 = arith.subf %12, %13 : vector<1x64xf32>
    %cst_8 = arith.constant 0.000000e+00 : f32
    %15 = vector.broadcast %cst_8 : f32 to vector<1x64xf32>
    %16 = arith.maximumf %14, %15 : vector<1x64xf32>
    %c0_9 = arith.constant 0 : index
    %c0_10 = arith.constant 0 : index
    %17 = vector.load %arg8[%c0_9, %c0_10] : memref<4x64xf32, #tpu.memory_space<vmem>>, vector<1x64xf32>
    %c0_11 = arith.constant 0 : index
    %c0_12 = arith.constant 0 : index
    %18 = vector.load %arg9[%c0_11, %c0_12] : memref<4x64xf32, #tpu.memory_space<vmem>>, vector<1x64xf32>
    %19 = vector.broadcast %10 : vector<1x64xf32> to vector<16x64xf32>
    %20 = arith.subf %3, %19 : vector<16x64xf32>
    %cst_13 = arith.constant 9.99999974E-6 : f32
    %21 = vector.broadcast %cst_13 : f32 to vector<1x64xf32>
    %22 = arith.addf %16, %21 : vector<1x64xf32>
    %23 = math.rsqrt %22 : vector<1x64xf32>
    %24 = vector.broadcast %23 : vector<1x64xf32> to vector<16x64xf32>
    %25 = arith.mulf %20, %24 : vector<16x64xf32>
    %26 = vector.broadcast %17 : vector<1x64xf32> to vector<16x64xf32>
    %27 = arith.mulf %25, %26 : vector<16x64xf32>
    %28 = vector.broadcast %18 : vector<1x64xf32> to vector<16x64xf32>
    %29 = arith.addf %27, %28 : vector<16x64xf32>
    %cst_14 = arith.constant 0.000000e+00 : f32
    %30 = vector.broadcast %cst_14 : f32 to vector<16x64xf32>
    %31 = arith.maximumf %29, %30 : vector<16x64xf32>
    %c0_15 = arith.constant 0 : index
    %c0_16 = arith.constant 0 : index
    %32 = vector.load %arg3[%c0_15, %c0_16] : memref<64x64xf32, #tpu.memory_space<vmem>>, vector<64x64xf32>
    %cst_17 = arith.constant dense<0.000000e+00> : vector<16x64xf32>
    %33 = tpu.matmul %31, %32, %cst_17 {dimension_numbers = #tpu.dot_dimension_numbers<[1], [0], [0], [1], [0, 0, 1, 1], [], []>} : vector<16x64xf32>, vector<64x64xf32>, vector<16x64xf32> -> vector<16x64xf32>
    %cst_18 = arith.constant dense<0.000000e+00> : vector<64xf32>
    %34 = vector.multi_reduction <add>, %33, %cst_18 [0] : vector<16x64xf32> to vector<64xf32>
    %35 = vector.shape_cast %34 : vector<64xf32> to vector<1x64xf32>
    %36 = arith.mulf %33, %33 : vector<16x64xf32>
    %cst_19 = arith.constant dense<0.000000e+00> : vector<64xf32>
    %37 = vector.multi_reduction <add>, %36, %cst_19 [0] : vector<16x64xf32> to vector<64xf32>
    %38 = vector.shape_cast %37 : vector<64xf32> to vector<1x64xf32>
    %cst_20 = arith.constant 6.250000e-02 : f32
    %39 = vector.broadcast %cst_20 : f32 to vector<1x64xf32>
    %40 = arith.mulf %35, %39 : vector<1x64xf32>
    %cst_21 = arith.constant 6.250000e-02 : f32
    %41 = vector.broadcast %cst_21 : f32 to vector<1x64xf32>
    %42 = arith.mulf %38, %41 : vector<1x64xf32>
    %43 = arith.mulf %40, %40 : vector<1x64xf32>
    %44 = arith.subf %42, %43 : vector<1x64xf32>
    %cst_22 = arith.constant 0.000000e+00 : f32
    %45 = vector.broadcast %cst_22 : f32 to vector<1x64xf32>
    %46 = arith.maximumf %44, %45 : vector<1x64xf32>
    %c1 = arith.constant 1 : index
    %c0_23 = arith.constant 0 : index
    %47 = vector.load %arg8[%c1, %c0_23] : memref<4x64xf32, #tpu.memory_space<vmem>>, vector<1x64xf32>
    %c1_24 = arith.constant 1 : index
    %c0_25 = arith.constant 0 : index
    %48 = vector.load %arg9[%c1_24, %c0_25] : memref<4x64xf32, #tpu.memory_space<vmem>>, vector<1x64xf32>
    %49 = vector.broadcast %40 : vector<1x64xf32> to vector<16x64xf32>
    %50 = arith.subf %33, %49 : vector<16x64xf32>
    %cst_26 = arith.constant 9.99999974E-6 : f32
    %51 = vector.broadcast %cst_26 : f32 to vector<1x64xf32>
    %52 = arith.addf %46, %51 : vector<1x64xf32>
    %53 = math.rsqrt %52 : vector<1x64xf32>
    %54 = vector.broadcast %53 : vector<1x64xf32> to vector<16x64xf32>
    %55 = arith.mulf %50, %54 : vector<16x64xf32>
    %56 = vector.broadcast %47 : vector<1x64xf32> to vector<16x64xf32>
    %57 = arith.mulf %55, %56 : vector<16x64xf32>
    %58 = vector.broadcast %48 : vector<1x64xf32> to vector<16x64xf32>
    %59 = arith.addf %57, %58 : vector<16x64xf32>
    %cst_27 = arith.constant 0.000000e+00 : f32
    %60 = vector.broadcast %cst_27 : f32 to vector<16x64xf32>
    %61 = arith.maximumf %59, %60 : vector<16x64xf32>
    %c0_28 = arith.constant 0 : index
    %c0_29 = arith.constant 0 : index
    %62 = vector.load %arg4[%c0_28, %c0_29] : memref<64x64xf32, #tpu.memory_space<vmem>>, vector<64x64xf32>
    %cst_30 = arith.constant dense<0.000000e+00> : vector<16x64xf32>
    %63 = tpu.matmul %61, %62, %cst_30 {dimension_numbers = #tpu.dot_dimension_numbers<[1], [0], [0], [1], [0, 0, 1, 1], [], []>} : vector<16x64xf32>, vector<64x64xf32>, vector<16x64xf32> -> vector<16x64xf32>
    %cst_31 = arith.constant dense<0.000000e+00> : vector<64xf32>
    %64 = vector.multi_reduction <add>, %63, %cst_31 [0] : vector<16x64xf32> to vector<64xf32>
    %65 = vector.shape_cast %64 : vector<64xf32> to vector<1x64xf32>
    %66 = arith.mulf %63, %63 : vector<16x64xf32>
    %cst_32 = arith.constant dense<0.000000e+00> : vector<64xf32>
    %67 = vector.multi_reduction <add>, %66, %cst_32 [0] : vector<16x64xf32> to vector<64xf32>
    %68 = vector.shape_cast %67 : vector<64xf32> to vector<1x64xf32>
    %cst_33 = arith.constant 6.250000e-02 : f32
    %69 = vector.broadcast %cst_33 : f32 to vector<1x64xf32>
    %70 = arith.mulf %65, %69 : vector<1x64xf32>
    %cst_34 = arith.constant 6.250000e-02 : f32
    %71 = vector.broadcast %cst_34 : f32 to vector<1x64xf32>
    %72 = arith.mulf %68, %71 : vector<1x64xf32>
    %73 = arith.mulf %70, %70 : vector<1x64xf32>
    %74 = arith.subf %72, %73 : vector<1x64xf32>
    %cst_35 = arith.constant 0.000000e+00 : f32
    %75 = vector.broadcast %cst_35 : f32 to vector<1x64xf32>
    %76 = arith.maximumf %74, %75 : vector<1x64xf32>
    %c2 = arith.constant 2 : index
    %c0_36 = arith.constant 0 : index
    %77 = vector.load %arg8[%c2, %c0_36] : memref<4x64xf32, #tpu.memory_space<vmem>>, vector<1x64xf32>
    %c2_37 = arith.constant 2 : index
    %c0_38 = arith.constant 0 : index
    %78 = vector.load %arg9[%c2_37, %c0_38] : memref<4x64xf32, #tpu.memory_space<vmem>>, vector<1x64xf32>
    %79 = vector.broadcast %70 : vector<1x64xf32> to vector<16x64xf32>
    %80 = arith.subf %63, %79 : vector<16x64xf32>
    %cst_39 = arith.constant 9.99999974E-6 : f32
    %81 = vector.broadcast %cst_39 : f32 to vector<1x64xf32>
    %82 = arith.addf %76, %81 : vector<1x64xf32>
    %83 = math.rsqrt %82 : vector<1x64xf32>
    %84 = vector.broadcast %83 : vector<1x64xf32> to vector<16x64xf32>
    %85 = arith.mulf %80, %84 : vector<16x64xf32>
    %86 = vector.broadcast %77 : vector<1x64xf32> to vector<16x64xf32>
    %87 = arith.mulf %85, %86 : vector<16x64xf32>
    %88 = vector.broadcast %78 : vector<1x64xf32> to vector<16x64xf32>
    %89 = arith.addf %87, %88 : vector<16x64xf32>
    %cst_40 = arith.constant 0.000000e+00 : f32
    %90 = vector.broadcast %cst_40 : f32 to vector<16x64xf32>
    %91 = arith.maximumf %89, %90 : vector<16x64xf32>
    %c0_41 = arith.constant 0 : index
    %c0_42 = arith.constant 0 : index
    %92 = vector.load %arg5[%c0_41, %c0_42] : memref<64x64xf32, #tpu.memory_space<vmem>>, vector<64x64xf32>
    %cst_43 = arith.constant dense<0.000000e+00> : vector<16x64xf32>
    %93 = tpu.matmul %91, %92, %cst_43 {dimension_numbers = #tpu.dot_dimension_numbers<[1], [0], [0], [1], [0, 0, 1, 1], [], []>} : vector<16x64xf32>, vector<64x64xf32>, vector<16x64xf32> -> vector<16x64xf32>
    %cst_44 = arith.constant dense<0.000000e+00> : vector<64xf32>
    %94 = vector.multi_reduction <add>, %93, %cst_44 [0] : vector<16x64xf32> to vector<64xf32>
    %95 = vector.shape_cast %94 : vector<64xf32> to vector<1x64xf32>
    %96 = arith.mulf %93, %93 : vector<16x64xf32>
    %cst_45 = arith.constant dense<0.000000e+00> : vector<64xf32>
    %97 = vector.multi_reduction <add>, %96, %cst_45 [0] : vector<16x64xf32> to vector<64xf32>
    %98 = vector.shape_cast %97 : vector<64xf32> to vector<1x64xf32>
    %cst_46 = arith.constant 6.250000e-02 : f32
    %99 = vector.broadcast %cst_46 : f32 to vector<1x64xf32>
    %100 = arith.mulf %95, %99 : vector<1x64xf32>
    %cst_47 = arith.constant 6.250000e-02 : f32
    %101 = vector.broadcast %cst_47 : f32 to vector<1x64xf32>
    %102 = arith.mulf %98, %101 : vector<1x64xf32>
    %103 = arith.mulf %100, %100 : vector<1x64xf32>
    %104 = arith.subf %102, %103 : vector<1x64xf32>
    %cst_48 = arith.constant 0.000000e+00 : f32
    %105 = vector.broadcast %cst_48 : f32 to vector<1x64xf32>
    %106 = arith.maximumf %104, %105 : vector<1x64xf32>
    %c3 = arith.constant 3 : index
    %c0_49 = arith.constant 0 : index
    %107 = vector.load %arg8[%c3, %c0_49] : memref<4x64xf32, #tpu.memory_space<vmem>>, vector<1x64xf32>
    %c3_50 = arith.constant 3 : index
    %c0_51 = arith.constant 0 : index
    %108 = vector.load %arg9[%c3_50, %c0_51] : memref<4x64xf32, #tpu.memory_space<vmem>>, vector<1x64xf32>
    %109 = vector.broadcast %100 : vector<1x64xf32> to vector<16x64xf32>
    %110 = arith.subf %93, %109 : vector<16x64xf32>
    %cst_52 = arith.constant 9.99999974E-6 : f32
    %111 = vector.broadcast %cst_52 : f32 to vector<1x64xf32>
    %112 = arith.addf %106, %111 : vector<1x64xf32>
    %113 = math.rsqrt %112 : vector<1x64xf32>
    %114 = vector.broadcast %113 : vector<1x64xf32> to vector<16x64xf32>
    %115 = arith.mulf %110, %114 : vector<16x64xf32>
    %116 = vector.broadcast %107 : vector<1x64xf32> to vector<16x64xf32>
    %117 = arith.mulf %115, %116 : vector<16x64xf32>
    %118 = vector.broadcast %108 : vector<1x64xf32> to vector<16x64xf32>
    %119 = arith.addf %117, %118 : vector<16x64xf32>
    %cst_53 = arith.constant 0.000000e+00 : f32
    %120 = vector.broadcast %cst_53 : f32 to vector<16x64xf32>
    %121 = arith.maximumf %119, %120 : vector<16x64xf32>
    %c0_54 = arith.constant 0 : index
    %c0_55 = arith.constant 0 : index
    %122 = vector.load %arg6[%c0_54, %c0_55] : memref<64x128xf32, #tpu.memory_space<vmem>>, vector<64x128xf32>
    %cst_56 = arith.constant dense<0.000000e+00> : vector<16x128xf32>
    %123 = tpu.matmul %121, %122, %cst_56 {dimension_numbers = #tpu.dot_dimension_numbers<[1], [0], [0], [1], [0, 0, 1, 1], [], []>} : vector<16x64xf32>, vector<64x128xf32>, vector<16x128xf32> -> vector<16x128xf32>
    %c0_57 = arith.constant 0 : index
    %c0_58 = arith.constant 0 : index
    %124 = vector.load %arg7[%c0_57, %c0_58] : memref<1x128xf32, #tpu.memory_space<vmem>>, vector<1x128xf32>
    %125 = vector.broadcast %124 : vector<1x128xf32> to vector<16x128xf32>
    %126 = arith.addf %123, %125 : vector<16x128xf32>
    %cst_59 = arith.constant dense<0xFF800000> : vector<16xf32>
    %127 = vector.multi_reduction <maximumf>, %126, %cst_59 [1] : vector<16x128xf32> to vector<16xf32>
    %128 = vector.shape_cast %127 : vector<16xf32> to vector<16x1xf32>
    %129 = vector.broadcast %128 : vector<16x1xf32> to vector<16x128xf32>
    %130 = arith.subf %126, %129 : vector<16x128xf32>
    %131 = math.exp %130 : vector<16x128xf32>
    %cst_60 = arith.constant dense<0.000000e+00> : vector<16xf32>
    %132 = vector.multi_reduction <add>, %131, %cst_60 [1] : vector<16x128xf32> to vector<16xf32>
    %133 = vector.shape_cast %132 : vector<16xf32> to vector<16x1xf32>
    %134 = tpu.reciprocal %133 {approx = true} : vector<16x1xf32> -> vector<16x1xf32>
    %135 = vector.broadcast %134 : vector<16x1xf32> to vector<16x128xf32>
    %136 = arith.mulf %131, %135 : vector<16x128xf32>
    %c0_61 = arith.constant 0 : index
    %c0_62 = arith.constant 0 : index
    %c0_63 = arith.constant 0 : index
    %137 = vector.load %arg10[%c0_61, %c0_62, %c0_63] : memref<1x16x128xf32, #tpu.memory_space<vmem>>, vector<1x16x128xf32>
    %138 = vector.shape_cast %137 : vector<1x16x128xf32> to vector<16x128xf32>
    %139 = vector.shape_cast %136 : vector<16x128xf32> to vector<1x16x128xf32>
    tpu.vector_store %arg10[%c0_61, %c0_62, %c0_63], %139 {strides = array<i32>} : memref<1x16x128xf32, #tpu.memory_space<vmem>>, vector<1x16x128xf32>,
    return
  }
  func.func @transform_0(%arg0: i32) -> (i32, i32, i32) {
    %c0_i32 = arith.constant 0 : i32
    %c0_i32_0 = arith.constant 0 : i32
    %c0_i32_1 = arith.constant 0 : i32
    return %arg0, %c0_i32, %c0_i32_0 : i32, i32, i32
  }
  func.func @transform_1(%arg0: i32) -> (i32, i32) {
    %c0_i32 = arith.constant 0 : i32
    %c0_i32_0 = arith.constant 0 : i32
    %c0_i32_1 = arith.constant 0 : i32
    return %c0_i32, %c0_i32_0 : i32, i32
  }
  func.func @transform_2(%arg0: i32) -> (i32, i32) {
    %c0_i32 = arith.constant 0 : i32
    %c0_i32_0 = arith.constant 0 : i32
    %c0_i32_1 = arith.constant 0 : i32
    return %c0_i32, %c0_i32_0 : i32, i32
  }
  func.func @transform_3(%arg0: i32) -> (i32, i32) {
    %c0_i32 = arith.constant 0 : i32
    %c0_i32_0 = arith.constant 0 : i32
    %c0_i32_1 = arith.constant 0 : i32
    return %c0_i32, %c0_i32_0 : i32, i32
  }
  func.func @transform_4(%arg0: i32) -> (i32, i32) {
    %c0_i32 = arith.constant 0 : i32
    %c0_i32_0 = arith.constant 0 : i32
    %c0_i32_1 = arith.constant 0 : i32
    return %c0_i32, %c0_i32_0 : i32, i32
  }
  func.func @transform_5(%arg0: i32) -> (i32, i32) {
    %c0_i32 = arith.constant 0 : i32
    %c0_i32_0 = arith.constant 0 : i32
    %c0_i32_1 = arith.constant 0 : i32
    return %c0_i32, %c0_i32_0 : i32, i32
  }
  func.func @transform_6(%arg0: i32) -> (i32, i32) {
    %c0_i32 = arith.constant 0 : i32
    %c0_i32_0 = arith.constant 0 : i32
    %c0_i32_1 = arith.constant 0 : i32
    return %c0_i32, %c0_i32_0 : i32, i32
  }
  func.func @transform_7(%arg0: i32) -> (i32, i32) {
    %c0_i32 = arith.constant 0 : i32
    %c0_i32_0 = arith.constant 0 : i32
    %c0_i32_1 = arith.constant 0 : i32
    return %c0_i32, %c0_i32_0 : i32, i32
  }
  func.func @transform_8(%arg0: i32) -> (i32, i32) {
    %c0_i32 = arith.constant 0 : i32
    %c0_i32_0 = arith.constant 0 : i32
    %c0_i32_1 = arith.constant 0 : i32
    return %c0_i32, %c0_i32_0 : i32, i32
  }
  func.func @transform_9(%arg0: i32) -> (i32, i32, i32) {
    %c0_i32 = arith.constant 0 : i32
    %c0_i32_0 = arith.constant 0 : i32
    %c0_i32_1 = arith.constant 0 : i32
    return %arg0, %c0_i32, %c0_i32_0 : i32, i32, i32
  }
}

</mosaic_0001>

<llo_original>
// kernel: tpu_custom_call.1
$region0: #{tpu_custom_call.1}
  #allocation0 [shape = 'u32[]', space=smem, size = 0x4, offset = 0x4, fixed_abs, tag = 'smem constant byte address 0x4 - core index']
  #allocation1 [shape = 'u32[144,128]{1,0:T(1,128)}', space=vmem, size = 0x12000, scoped, tag = 'internal scratch']
  %s0 = inlined_call_operand.hbm [shape: f32[4,16,60], index: 0, kind: input, shape index: {}]
  %s1 = inlined_call_operand.hbm [shape: f32[60,64], index: 1, kind: input, shape index: {}]
  %s2 = inlined_call_operand.hbm [shape: f32[64,64], index: 2, kind: input, shape index: {}]
  %s3 = inlined_call_operand.hbm [shape: f32[64,64], index: 3, kind: input, shape index: {}]
  %s4 = inlined_call_operand.hbm [shape: f32[64,64], index: 4, kind: input, shape index: {}]
  %s5 = inlined_call_operand.hbm [shape: f32[64,128], index: 5, kind: input, shape index: {}]
  %s6 = inlined_call_operand.vmem [shape: f32[1,128], index: 6, kind: input, shape index: {}]
  %s7 = inlined_call_operand.vmem [shape: f32[4,64], index: 7, kind: input, shape index: {}]
  %s8 = inlined_call_operand.vmem [shape: f32[4,64], index: 8, kind: input, shape index: {}]
  %s9 = inlined_call_operand.hbm [shape: f32[4,16,128], index: 9, kind: output, shape index: {}]
  %s10 = sld [smem:[#allocation0]]
  $region93: #{tpu_custom_call.1} parent=0
    _
  %s12 = ssub.s32 1, %s10
  %s13 = scalar_select 0, %s12, %s10
  $region1: #{tpu_custom_call.1} parent=0
    #allocation2 [shape = 'u8[16384]{0}', space=vmem, size = 0x4000, scoped, tag = 'input window, operand 0']
    #allocation3 [shape = 's32[2]{0}', space=sflag, size = 0x8, scoped, tag = 'scoped memory for tpu_custom_call.1']
    #allocation4 [shape = 's32[2]{0}', space=sflag, size = 0x8, scoped, tag = 'scoped memory for tpu_custom_call.1']
    #allocation5 [shape = 'u8[32768]{0}', space=vmem, size = 0x8000, scoped, tag = 'input window, operand 1, single buffered']
    #allocation6 [shape = 's32[1]{0}', space=sflag, size = 0x4, scoped, tag = 'scoped memory for tpu_custom_call.1']
    #allocation7 [shape = 'u8[32768]{0}', space=vmem, size = 0x8000, scoped, tag = 'input window, operand 2, single buffered']
    #allocation8 [shape = 'u8[32768]{0}', space=vmem, size = 0x8000, scoped, tag = 'input window, operand 3, single buffered']
    #allocation9 [shape = 's32[1]{0}', space=sflag, size = 0x4, scoped, tag = 'scoped memory for tpu_custom_call.1']
    #allocation10 [shape = 'u8[32768]{0}', space=vmem, size = 0x8000, scoped, tag = 'input window, operand 4, single buffered']
    #allocation11 [shape = 'u8[32768]{0}', space=vmem, size = 0x8000, scoped, tag = 'input window, operand 5, single buffered']
    #allocation12 [shape = 's32[1]{0}', space=sflag, size = 0x4, scoped, tag = 'scoped memory for tpu_custom_call.1']
    #allocation13 [shape = 'u8[16384]{0}', space=vmem, size = 0x4000, scoped, tag = 'output window, operand 0']
    %14 = vsyncpa [#allocation3], 0
    %s15 = scalar_lea.sflag [#allocation3], 1
    %16 = vsyncpa %s15, 0
    %17 = vsyncpa [#allocation6], 0
    %18 = vsyncpa [#allocation9], 0
    %19 = vsyncpa [#allocation12], 0
    %20 = vsyncpa [#allocation4], 0
    %s21 = scalar_lea.sflag [#allocation4], 1
    %22 = vsyncpa %s21, 0
    loop: start=0, step=1, limit=6
    $region2: #{tpu_custom_call.1} parent=1 // loop_pre_header
      _
    $region3: #{tpu_custom_call.1} parent=1 // loop_header
      %s24 = sphi 0, %s28
      %p25 = scmp.ge.s32.totalorder %s24, 6
      %s34 = sphi 0, %s36
      %s37 = sphi 0, %s34
      %s38 = sphi 0, %s37
      %s54 = sphi 0, %s38
      %s58 = sphi 0, %s58
      %s60 = sphi 0, %s58
      %s61 = sphi 0, %s60
      %s75 = sphi 0, %s61
      %s79 = sphi 0, %s79
      %s81 = sphi 0, %s79
      %s82 = sphi 0, %s81
      %s96 = sphi 0, %s82
      %s100 = sphi 0, %s100
      %s102 = sphi 0, %s100
      %s103 = sphi 0, %s102
      %s117 = sphi 0, %s103
      %s121 = sphi 0, %s121
      %s123 = sphi 0, %s121
      %s124 = sphi 0, %s123
      %s138 = sphi 0, %s124
      %s142 = sphi 0, %s142
      %s144 = sphi 0, %s142
      %s145 = sphi 0, %s144
      %s159 = sphi 0, %s145
      %s163 = sphi 0, %s163
      %s165 = sphi 0, %s163
      %s166 = sphi 0, %s165
      %s180 = sphi 0, %s166
      %s184 = sphi 0, %s184
      %s186 = sphi 0, %s184
      %s187 = sphi 0, %s186
      %s201 = sphi 0, %s187
      %s205 = sphi 0, %s205
      %s207 = sphi 0, %s205
      %s208 = sphi 0, %s207
      %s222 = sphi 0, %s208
      %s228 = sphi 0, %s230
      %s231 = sphi 0, %s228
      %s232 = sphi 0, %s231
      %s248 = sphi 0, %s232
    $region4: #{tpu_custom_call.1} parent=1 // loop_header_branch
      %27 = sbr.rel (%p25) target = $region8
    $region5: #{tpu_custom_call.1} parent=1 // loop_body
      %s29 = ssub.s32 %s24, 1
      %s30 = ssub.s32 %s24, 2
      %s31 = sadd.s32 %s24, 1
      %s32 = ssub.s32 %s24, %s31
      %p33 = scmp.eq.s32.totalorder %s32, 0
      %s35 = sadd.s32 %s34, 1
      %s36 = scalar_select %p33, %s34, %s35
      %p39 = pneg %p33
      %p40 = scmp.eq.s32.totalorder %s24, 3
      %p41 = por %p39, %p40
      %p42 = scmp.ne.s32.totalorder %s34, %s37
      %p43 = scmp.eq.s32.totalorder %s24, 0
      %p44 = por %p42, %p43
      %p45 = scmp.ne.s32.totalorder %s34, %s37
      %p46 = scmp.eq.s32.totalorder %s29, 3
      %p47 = por %p45, %p46
      %p48 = scmp.ne.s32.totalorder %s37, %s38
      %p49 = scmp.eq.s32.totalorder %s29, 0
      %p50 = por %p48, %p49
      %p51 = scmp.ne.s32.totalorder %s37, %s38
      %p52 = scmp.eq.s32.totalorder %s30, 3
      %p53 = por %p51, %p52
      %p55 = scmp.ne.s32.totalorder %s38, %s54
      %p56 = scmp.eq.s32.totalorder %s30, 0
      %p57 = por %p55, %p56
      %s59 = sadd.s32 %s58, 1
      %p62 = scmp.eq.s32.totalorder %s24, 3
      %p63 = scmp.ne.s32.totalorder %s58, %s60
      %p64 = scmp.eq.s32.totalorder %s24, 0
      %p65 = por %p63, %p64
      %p66 = scmp.ne.s32.totalorder %s58, %s60
      %p67 = scmp.eq.s32.totalorder %s29, 3
      %p68 = por %p66, %p67
      %p69 = scmp.ne.s32.totalorder %s60, %s61
      %p70 = scmp.eq.s32.totalorder %s29, 0
      %p71 = por %p69, %p70
      %p72 = scmp.ne.s32.totalorder %s60, %s61
      %p73 = scmp.eq.s32.totalorder %s30, 3
      %p74 = por %p72, %p73
      %p76 = scmp.ne.s32.totalorder %s61, %s75
      %p77 = scmp.eq.s32.totalorder %s30, 0
      %p78 = por %p76, %p77
      %s80 = sadd.s32 %s79, 1
      %p83 = scmp.eq.s32.totalorder %s24, 3
      %p84 = scmp.ne.s32.totalorder %s79, %s81
      %p85 = scmp.eq.s32.totalorder %s24, 0
      %p86 = por %p84, %p85
      %p87 = scmp.ne.s32.totalorder %s79, %s81
      %p88 = scmp.eq.s32.totalorder %s29, 3
      %p89 = por %p87, %p88
      %p90 = scmp.ne.s32.totalorder %s81, %s82
      %p91 = scmp.eq.s32.totalorder %s29, 0
      %p92 = por %p90, %p91
      %p93 = scmp.ne.s32.totalorder %s81, %s82
      %p94 = scmp.eq.s32.totalorder %s30, 3
      %p95 = por %p93, %p94
      %p97 = scmp.ne.s32.totalorder %s82, %s96
      %p98 = scmp.eq.s32.totalorder %s30, 0
      %p99 = por %p97, %p98
      %s101 = sadd.s32 %s100, 1
      %p104 = scmp.eq.s32.totalorder %s24, 3
      %p105 = scmp.ne.s32.totalorder %s100, %s102
      %p106 = scmp.eq.s32.totalorder %s24, 0
      %p107 = por %p105, %p106
      %p108 = scmp.ne.s32.totalorder %s100, %s102
      %p109 = scmp.eq.s32.totalorder %s29, 3
      %p110 = por %p108, %p109
      %p111 = scmp.ne.s32.totalorder %s102, %s103
      %p112 = scmp.eq.s32.totalorder %s29, 0
      %p113 = por %p111, %p112
      %p114 = scmp.ne.s32.totalorder %s102, %s103
      %p115 = scmp.eq.s32.totalorder %s30, 3
      %p116 = por %p114, %p115
      %p118 = scmp.ne.s32.totalorder %s103, %s117
      %p119 = scmp.eq.s32.totalorder %s30, 0
      %p120 = por %p118, %p119
      %s122 = sadd.s32 %s121, 1
      %p125 = scmp.eq.s32.totalorder %s24, 3
      %p126 = scmp.ne.s32.totalorder %s121, %s123
      %p127 = scmp.eq.s32.totalorder %s24, 0
      %p128 = por %p126, %p127
      %p129 = scmp.ne.s32.totalorder %s121, %s123
      %p130 = scmp.eq.s32.totalorder %s29, 3
      %p131 = por %p129, %p130
      %p132 = scmp.ne.s32.totalorder %s123, %s124
      %p133 = scmp.eq.s32.totalorder %s29, 0
      %p134 = por %p132, %p133
      %p135 = scmp.ne.s32.totalorder %s123, %s124
      %p136 = scmp.eq.s32.totalorder %s30, 3
      %p137 = por %p135, %p136
      %p139 = scmp.ne.s32.totalorder %s124, %s138
      %p140 = scmp.eq.s32.totalorder %s30, 0
      %p141 = por %p139, %p140
      %s143 = sadd.s32 %s142, 1
      %p146 = scmp.eq.s32.totalorder %s24, 3
      %p147 = scmp.ne.s32.totalorder %s142, %s144
      %p148 = scmp.eq.s32.totalorder %s24, 0
      %p149 = por %p147, %p148
      %p150 = scmp.ne.s32.totalorder %s142, %s144
      %p151 = scmp.eq.s32.totalorder %s29, 3
      %p152 = por %p150, %p151
      %p153 = scmp.ne.s32.totalorder %s144, %s145
      %p154 = scmp.eq.s32.totalorder %s29, 0
      %p155 = por %p153, %p154
      %p156 = scmp.ne.s32.totalorder %s144, %s145
      %p157 = scmp.eq.s32.totalorder %s30, 3
      %p158 = por %p156, %p157
      %p160 = scmp.ne.s32.totalorder %s145, %s159
      %p161 = scmp.eq.s32.totalorder %s30, 0
      %p162 = por %p160, %p161
      %s164 = sadd.s32 %s163, 1
      %p167 = scmp.eq.s32.totalorder %s24, 3
      %p168 = scmp.ne.s32.totalorder %s163, %s165
      %p169 = scmp.eq.s32.totalorder %s24, 0
      %p170 = por %p168, %p169
      %p171 = scmp.ne.s32.totalorder %s163, %s165
      %p172 = scmp.eq.s32.totalorder %s29, 3
      %p173 = por %p171, %p172
      %p174 = scmp.ne.s32.totalorder %s165, %s166
      %p175 = scmp.eq.s32.totalorder %s29, 0
      %p176 = por %p174, %p175
      %p177 = scmp.ne.s32.totalorder %s165, %s166
      %p178 = scmp.eq.s32.totalorder %s30, 3
      %p179 = por %p177, %p178
      %p181 = scmp.ne.s32.totalorder %s166, %s180
      %p182 = scmp.eq.s32.totalorder %s30, 0
      %p183 = por %p181, %p182
      %s185 = sadd.s32 %s184, 1
      %p188 = scmp.eq.s32.totalorder %s24, 3
      %p189 = scmp.ne.s32.totalorder %s184, %s186
      %p190 = scmp.eq.s32.totalorder %s24, 0
      %p191 = por %p189, %p190
      %p192 = scmp.ne.s32.totalorder %s184, %s186
      %p193 = scmp.eq.s32.totalorder %s29, 3
      %p194 = por %p192, %p193
      %p195 = scmp.ne.s32.totalorder %s186, %s187
      %p196 = scmp.eq.s32.totalorder %s29, 0
      %p197 = por %p195, %p196
      %p198 = scmp.ne.s32.totalorder %s186, %s187
      %p199 = scmp.eq.s32.totalorder %s30, 3
      %p200 = por %p198, %p199
      %p202 = scmp.ne.s32.totalorder %s187, %s201
      %p203 = scmp.eq.s32.totalorder %s30, 0
      %p204 = por %p202, %p203
      %s206 = sadd.s32 %s205, 1
      %p209 = scmp.eq.s32.totalorder %s24, 3
      %p210 = scmp.ne.s32.totalorder %s205, %s207
      %p211 = scmp.eq.s32.totalorder %s24, 0
      %p212 = por %p210, %p211
      %p213 = scmp.ne.s32.totalorder %s205, %s207
      %p214 = scmp.eq.s32.totalorder %s29, 3
      %p215 = por %p213, %p214
      %p216 = scmp.ne.s32.totalorder %s207, %s208
      %p217 = scmp.eq.s32.totalorder %s29, 0
      %p218 = por %p216, %p217
      %p219 = scmp.ne.s32.totalorder %s207, %s208
      %p220 = scmp.eq.s32.totalorder %s30, 3
      %p221 = por %p219, %p220
      %p223 = scmp.ne.s32.totalorder %s208, %s222
      %p224 = scmp.eq.s32.totalorder %s30, 0
      %p225 = por %p223, %p224
      %s226 = ssub.s32 %s24, %s31
      %p227 = scmp.eq.s32.totalorder %s226, 0
      %s229 = sadd.s32 %s228, 1
      %s230 = scalar_select %p227, %s228, %s229
      %p233 = pneg %p227
      %p234 = scmp.eq.s32.totalorder %s24, 3
      %p235 = por %p233, %p234
      %p236 = scmp.ne.s32.totalorder %s228, %s231
      %p237 = scmp.eq.s32.totalorder %s24, 0
      %p238 = por %p236, %p237
      %p239 = scmp.ne.s32.totalorder %s228, %s231
      %p240 = scmp.eq.s32.totalorder %s29, 3
      %p241 = por %p239, %p240
      %p242 = scmp.ne.s32.totalorder %s231, %s232
      %p243 = scmp.eq.s32.totalorder %s29, 0
      %p244 = por %p242, %p243
      %p245 = scmp.ne.s32.totalorder %s231, %s232
      %p246 = scmp.eq.s32.totalorder %s30, 3
      %p247 = por %p245, %p246
      %p249 = scmp.ne.s32.totalorder %s232, %s248
      %p250 = scmp.eq.s32.totalorder %s30, 0
      %p251 = por %p249, %p250
      %p252 = scmp.le.s32.totalorder 1, %s24
      %p253 = scmp.lt.s32.totalorder %s24, 5
      %p254 = pnand %p252, %p253
      %p255 = pneg %p254
      // Predicated region
      $region9: #{tpu_custom_call.1} parent=5 // pred_check
        _
      $region10: #{tpu_custom_call.1} parent=5 // pred_check_branch
        %257 = sbr.rel (%p254) target = $region12
      $region11: #{tpu_custom_call.1} parent=5 // pred_region
        %s258 = ssub.s32 %s24, 1
        // Predicated region
        $region13: #{tpu_custom_call.1} parent=11 // pred_check
          %p259 = pneg %p71
        $region14: #{tpu_custom_call.1} parent=11 // pred_check_branch
          %261 = sbr.rel (%p259) target = $region16
        $region15: #{tpu_custom_call.1} parent=11 // pred_region
          %s263 = ssub.s32 1024, 1024
          %264 = vsyncadd [#allocation6], %s263
          %s265 = sshll.u32 [#allocation5], 4
          %s266 = int_to_ptr.vmem [resolvable:$true] %s265
          %271 = dma.hbm_to_vmem [thread:$0]  %s1, 1024, %s266, [#allocation6], 128, 128, 8
        $region16: #{tpu_custom_call.1} parent=11 // pred_fallthru
          _
        // Predicated region
        $region17: #{tpu_custom_call.1} parent=11 // pred_check
          %p272 = pneg %p92
        $region18: #{tpu_custom_call.1} parent=11 // pred_check_branch
          %274 = sbr.rel (%p272) target = $region20
        $region19: #{tpu_custom_call.1} parent=11 // pred_region
          %s276 = ssub.s32 1024, 1024
          %277 = vsyncadd [#allocation6], %s276
          %s278 = sshll.u32 [#allocation7], 4
          %s279 = int_to_ptr.vmem [resolvable:$true] %s278
          %284 = dma.hbm_to_vmem [thread:$0]  %s2, 1024, %s279, [#allocation6], 128, 128, 8
        $region20: #{tpu_custom_call.1} parent=11 // pred_fallthru
          _
        // Predicated region
        $region21: #{tpu_custom_call.1} parent=11 // pred_check
          %p285 = pneg %p113
        $region22: #{tpu_custom_call.1} parent=11 // pred_check_branch
          %287 = sbr.rel (%p285) target = $region24
        $region23: #{tpu_custom_call.1} parent=11 // pred_region
          %s289 = ssub.s32 1024, 1024
          %290 = vsyncadd [#allocation9], %s289
          %s291 = sshll.u32 [#allocation8], 4
          %s292 = int_to_ptr.vmem [resolvable:$true] %s291
          %297 = dma.hbm_to_vmem [thread:$0]  %s3, 1024, %s292, [#allocation9], 128, 128, 8
        $region24: #{tpu_custom_call.1} parent=11 // pred_fallthru
          _
        // Predicated region
        $region25: #{tpu_custom_call.1} parent=11 // pred_check
          %p298 = pneg %p134
        $region26: #{tpu_custom_call.1} parent=11 // pred_check_branch
          %300 = sbr.rel (%p298) target = $region28
        $region27: #{tpu_custom_call.1} parent=11 // pred_region
          %s302 = ssub.s32 1024, 1024
          %303 = vsyncadd [#allocation9], %s302
          %s304 = sshll.u32 [#allocation10], 4
          %s305 = int_to_ptr.vmem [resolvable:$true] %s304
          %310 = dma.hbm_to_vmem [thread:$0]  %s4, 1024, %s305, [#allocation9], 128, 128, 8
        $region28: #{tpu_custom_call.1} parent=11 // pred_fallthru
          _
        // Predicated region
        $region29: #{tpu_custom_call.1} parent=11 // pred_check
          %p311 = pneg %p155
        $region30: #{tpu_custom_call.1} parent=11 // pred_check_branch
          %313 = sbr.rel (%p311) target = $region32
        $region31: #{tpu_custom_call.1} parent=11 // pred_region
          %s315 = ssub.s32 1024, 1024
          %316 = vsyncadd [#allocation12], %s315
          %s317 = sshll.u32 [#allocation11], 4
          %s318 = int_to_ptr.vmem [resolvable:$true] %s317
          %323 = dma.hbm_to_vmem [thread:$0]  %s5, 1024, %s318, [#allocation12], 128, 128, 8
        $region32: #{tpu_custom_call.1} parent=11 // pred_fallthru
          _
        // Predicated region
        $region33: #{tpu_custom_call.1} parent=11 // pred_check
          %p324 = pneg %p176
        $region34: #{tpu_custom_call.1} parent=11 // pred_check_branch
          %326 = sbr.rel (%p324) target = $region36
        $region35: #{tpu_custom_call.1} parent=11 // pred_region
          _
        $region36: #{tpu_custom_call.1} parent=11 // pred_fallthru
          _
        // Predicated region
        $region37: #{tpu_custom_call.1} parent=11 // pred_check
          %p327 = pneg %p197
        $region38: #{tpu_custom_call.1} parent=11 // pred_check_branch
          %329 = sbr.rel (%p327) target = $region40
        $region39: #{tpu_custom_call.1} parent=11 // pred_region
          _
        $region40: #{tpu_custom_call.1} parent=11 // pred_fallthru
          _
        // Predicated region
        $region41: #{tpu_custom_call.1} parent=11 // pred_check
          %p330 = pneg %p218
        $region42: #{tpu_custom_call.1} parent=11 // pred_check_branch
          %332 = sbr.rel (%p330) target = $region44
        $region43: #{tpu_custom_call.1} parent=11 // pred_region
          _
        $region44: #{tpu_custom_call.1} parent=11 // pred_fallthru
          _
      $region12: #{tpu_custom_call.1} parent=5 // pred_fallthru
        _
      %p333 = scmp.lt.s32.totalorder %s24, 4
      // Predicated region
      $region45: #{tpu_custom_call.1} parent=5 // pred_check
        %p334 = pneg %p333
      $region46: #{tpu_custom_call.1} parent=5 // pred_check_branch
        %336 = sbr.rel (%p334) target = $region48
      $region47: #{tpu_custom_call.1} parent=5 // pred_region
        // Predicated region
        $region49: #{tpu_custom_call.1} parent=47 // pred_check
          %p337 = pneg %p44
        $region50: #{tpu_custom_call.1} parent=47 // pred_check_branch
          %339 = sbr.rel (%p337) target = $region52
        $region51: #{tpu_custom_call.1} parent=47 // pred_region
          %s340 = sand.u32 %s34, 1
          %s341 = scalar_lea.sflag [#allocation3], %s340
          %s342 = sand.u32 %s34, 1
          %s343 = smul.addr %s342, 16
          %s344 = scalar_lea.vmem [#allocation2], %s343
          %s346 = ssub.s32 256, 256
          %347 = vsyncadd %s341, %s346
          %s348 = smul.addr %s24, 2
          %s349 = smul.addr %s348, 128
          %s350 = scalar_lea.hbm %s0, %s349
          %s351 = sshll.u32 %s344, 4
          %s352 = int_to_ptr.vmem [resolvable:$true] %s351
          %357 = dma.hbm_to_vmem [thread:$0]  %s350, 256, %s352, %s341, 128, 128, 8
        $region52: #{tpu_custom_call.1} parent=47 // pred_fallthru
          _
      $region48: #{tpu_custom_call.1} parent=5 // pred_fallthru
        _
      %p358 = scmp.le.s32.totalorder 1, %s24
      %p359 = scmp.lt.s32.totalorder %s24, 5
      %p360 = pnand %p358, %p359
      %p361 = pneg %p360
      // Predicated region
      $region53: #{tpu_custom_call.1} parent=5 // pred_check
        _
      $region54: #{tpu_custom_call.1} parent=5 // pred_check_branch
        %363 = sbr.rel (%p360) target = $region56
      $region55: #{tpu_custom_call.1} parent=5 // pred_region
        %s364 = ssub.s32 %s24, 1
        %s365 = sand.u32 %s37, 1
        %s366 = scalar_lea.sflag [#allocation3], %s365
        %s367 = sand.u32 %s37, 1
        %s368 = smul.addr %s367, 16
        %s369 = scalar_lea.vmem [#allocation2], %s368
        // Predicated region
        $region57: #{tpu_custom_call.1} parent=55 // pred_check
          %p370 = pneg %p50
        $region58: #{tpu_custom_call.1} parent=55 // pred_check_branch
          %372 = sbr.rel (%p370) target = $region60
        $region59: #{tpu_custom_call.1} parent=55 // pred_region
          %373 = dma.done %s366, 256
        $region60: #{tpu_custom_call.1} parent=55 // pred_fallthru
          _
        // Predicated region
        $region61: #{tpu_custom_call.1} parent=55 // pred_check
          %p374 = pneg %p71
        $region62: #{tpu_custom_call.1} parent=55 // pred_check_branch
          %376 = sbr.rel (%p374) target = $region64
        $region63: #{tpu_custom_call.1} parent=55 // pred_region
          %377 = dma.done [#allocation6], 1024
        $region64: #{tpu_custom_call.1} parent=55 // pred_fallthru
          _
        // Predicated region
        $region65: #{tpu_custom_call.1} parent=55 // pred_check
          %p378 = pneg %p92
        $region66: #{tpu_custom_call.1} parent=55 // pred_check_branch
          %380 = sbr.rel (%p378) target = $region68
        $region67: #{tpu_custom_call.1} parent=55 // pred_region
          %381 = dma.done [#allocation6], 1024
        $region68: #{tpu_custom_call.1} parent=55 // pred_fallthru
          _
        // Predicated region
        $region69: #{tpu_custom_call.1} parent=55 // pred_check
          %p382 = pneg %p113
        $region70: #{tpu_custom_call.1} parent=55 // pred_check_branch
          %384 = sbr.rel (%p382) target = $region72
        $region71: #{tpu_custom_call.1} parent=55 // pred_region
          %385 = dma.done [#allocation9], 1024
        $region72: #{tpu_custom_call.1} parent=55 // pred_fallthru
          _
        // Predicated region
        $region73: #{tpu_custom_call.1} parent=55 // pred_check
          %p386 = pneg %p134
        $region74: #{tpu_custom_call.1} parent=55 // pred_check_branch
          %388 = sbr.rel (%p386) target = $region76
        $region75: #{tpu_custom_call.1} parent=55 // pred_region
          %389 = dma.done [#allocation9], 1024
        $region76: #{tpu_custom_call.1} parent=55 // pred_fallthru
          _
        // Predicated region
        $region77: #{tpu_custom_call.1} parent=55 // pred_check
          %p390 = pneg %p155
        $region78: #{tpu_custom_call.1} parent=55 // pred_check_branch
          %392 = sbr.rel (%p390) target = $region80
        $region79: #{tpu_custom_call.1} parent=55 // pred_region
          %393 = dma.done [#allocation12], 1024
        $region80: #{tpu_custom_call.1} parent=55 // pred_fallthru
          _
        %s394 = sand.u32 %s37, 1
        %s395 = scalar_lea.sflag [#allocation3], %s394
        %s396 = sand.u32 %s37, 1
        %s397 = smul.addr %s396, 16
        %s398 = scalar_lea.vmem [#allocation2], %s397
        %p399 = pneg %p50
        %p400 = pneg %p47
        %p401 = pneg %p71
        %p402 = pneg %p68
        %p403 = pneg %p92
        %p404 = pneg %p89
        %p405 = pneg %p113
        %p406 = pneg %p110
        %p407 = pneg %p134
        %p408 = pneg %p131
        %p409 = pneg %p155
        %p410 = pneg %p152
        %p411 = pneg %p176
        %p412 = pneg %p173
        %p413 = pneg %p197
        %p414 = pneg %p194
        %p415 = pneg %p218
        %p416 = pneg %p215
        %p417 = pneg %p244
        %p418 = pneg %p241
        %s419 = sand.u32 %s231, 1
        %s420 = scalar_lea.sflag [#allocation4], %s419
        %s421 = sand.u32 %s231, 1
        %s422 = smul.addr %s421, 16
        %s423 = scalar_lea.vmem [#allocation13], %s422
        %v424 = vld [vmem:[%s369] sm:$0xff]
        %v425 = vld [vmem:[%s369 + $0x8] sm:$0xff]
        %v426 = vld [vmem:[#allocation5] sm:$0xff]
        %v427 = vld [vmem:[#allocation5 + $0x8] sm:$0xff]
        %v428 = vld [vmem:[#allocation5 + $0x10] sm:$0xff]
        %v429 = vld [vmem:[#allocation5 + $0x18] sm:$0xff]
        %v430 = vld [vmem:[#allocation5 + $0x20] sm:$0xff]
        %v431 = vld [vmem:[#allocation5 + $0x28] sm:$0xff]
        %v432 = vld [vmem:[#allocation5 + $0x30] sm:$0xff]
        %v433 = vld [vmem:[#allocation5 + $0x38] sm:$0xf]
        %vm434 = vcmask 490496
        %v436 = vsel %vm434, %v424, 0
        %v439 = vsel %vm434, %v425, 0
        %vm441 = vcmask 1043456
        %v443 = vsel %vm441, %v433, 0
        %445 = vmatprep.subr.mxu0 0.0
        %446 = vmatpush1.msra.mxu0 %v426
        %447 = vmatprep.subr.mxu0 0.0
        %448 = vmatpush1.msra.mxu0 %v427
        %449 = vmatprep.subr.mxu0 0.0
        %450 = vmatpush1.msra.mxu0 %v428
        %451 = vmatprep.subr.mxu0 0.0
        %452 = vmatpush1.msra.mxu0 %v429
        %453 = vmatprep.subr.mxu0 0.0
        %454 = vmatpush1.msra.mxu0 %v430
        %455 = vmatprep.subr.mxu0 0.0
        %456 = vmatpush1.msra.mxu0 %v431
        %457 = vmatprep.subr.mxu0 0.0
        %458 = vmatpush1.msra.mxu0 %v432
        %459 = vmatprep.subr.mxu0 0.0
        %460 = vmatpush1.msra.mxu0 %v443
        %461 = vmatprep.subr.mxu0 0.0
        %462 = vmatpush1.msra.mxu0 0.0
        %463 = vmatprep.subr.mxu0 0.0
        %464 = vmatpush1.msra.mxu0 0.0
        %465 = vmatprep.subr.mxu0 0.0
        %466 = vmatpush1.msra.mxu0 0.0
        %467 = vmatprep.subr.mxu0 0.0
        %468 = vmatpush1.msra.mxu0 0.0
        %469 = vmatprep.subr.mxu0 0.0
        %470 = vmatpush1.msra.mxu0 0.0
        %471 = vmatprep.subr.mxu0 0.0
        %472 = vmatpush1.msra.mxu0 0.0
        %473 = vmatprep.subr.mxu0 0.0
        %474 = vmatpush1.msra.mxu0 0.0
        %475 = vmatprep.subr.mxu0 0.0
        %476 = vmatpush1.msra.mxu0 0.0
        %477 = vmatprep.subr.mxu0 0.0
        %478 = vmatpush1.msra.mxu0 0.0
        %479 = vmatprep.subr.mxu0 0.0
        %480 = vmatpush1.msra.mxu0 0.0
        %481 = vmatprep.subr.mxu0 0.0
        %482 = vmatpush1.msra.mxu0 0.0
        %483 = vmatprep.subr.mxu0 0.0
        %484 = vmatpush1.msra.mxu0 0.0
        %485 = vmatprep.subr.mxu0 0.0
        %486 = vmatpush1.msra.mxu0 0.0
        %487 = vmatprep.subr.mxu0 0.0
        %488 = vmatpush1.msra.mxu0 0.0
        %489 = vmatprep.subr.mxu0 0.0
        %490 = vmatpush1.msra.mxu0 0.0
        %491 = vmatprep.subr.mxu0 0.0
        %492 = vmatpush1.msra.mxu0 0.0
        %493 = vmatprep.subr.mxu0 0.0
        %494 = vmatpush1.msra.mxu0 0.0
        %495 = vmatprep.subr.mxu0 0.0
        %496 = vmatpush1.msra.mxu0 0.0
        %497 = vmatprep.subr.mxu0 0.0
        %498 = vmatpush1.msra.mxu0 0.0
        %499 = vmatprep.subr.mxu0 0.0
        %500 = vmatpush1.msra.mxu0 0.0
        %501 = vmatprep.subr.mxu0 0.0
        %502 = vmatpush1.msra.mxu0 0.0
        %503 = vmatprep.subr.mxu0 0.0
        %504 = vmatpush1.msra.mxu0 0.0
        %505 = vmatprep.subr.mxu0 0.0
        %506 = vmatpush1.msra.mxu0 0.0
        %507 = vmatprep.subr.mxu0 0.0
        %508 = vmatpush1.msra.mxu0 0.0
        %509 = vmatprep.mubr.f32.mxu0 0.0
        %510 = vmatmul.mubr.f32.gmra.mrb[0].mxu0 %v436
        %v511 = vpop.f32.mrb[0].mxu0
        %v512 = vadd.f32 0.0, %v511
        %v513 = vpop.f32.mrb[0].mxu0
        %514 = vmatprep.mubr.f32.mxu0 0.0
        %515 = vmatmul.mubr.f32.gmra.mrb[0].mxu0 %v439
        %v516 = vpop.f32.mrb[0].mxu0
        %v517 = vadd.f32 0.0, %v516
        %v518 = vpop.f32.mrb[0].mxu0
        %519 = vdwg.mxu0
        %vm520 = vcmask 523264
        %v521 = vsel %vm520, %v512, 0.0
        %v522 = vsel %vm520, %v517, 0.0
        %v523 = vadd.f32 %v521, %v522
        %v524 = vrot.slane %v523, 4
        %v525 = vadd.f32 %v523, %v524
        %v526 = vrot.slane %v525, 2
        %v527 = vadd.f32 %v525, %v526
        %v528 = vrot.slane %v527, 1
        %v529 = vadd.f32 %v527, %v528
        %v530 = vmul.f32 %v512, %v512
        %v531 = vmul.f32 %v517, %v517
        %v532 = vsel %vm520, %v530, 0.0
        %v533 = vsel %vm520, %v531, 0.0
        %v534 = vadd.f32 %v532, %v533
        %v535 = vrot.slane %v534, 4
        %v536 = vadd.f32 %v534, %v535
        %v537 = vrot.slane %v536, 2
        %v538 = vadd.f32 %v536, %v537
        %v539 = vrot.slane %v538, 1
        %v540 = vadd.f32 %v538, %v539
        %v541 = vmul.f32 %v529, 0.0625
        %v542 = vmul.f32 %v540, 0.0625
        %v543 = vmul.f32 %v541, %v541
        %v544 = vsub.f32 %v542, %v543
        %v545 = vmax.f32 %v544, 0.0
        %v546 = vld [vmem:[%s7] sm:$0x1]
        %v547 = vld [vmem:[%s8] sm:$0x1]
        %v548 = vsub.f32 %v512, %v541
        %v549 = vsub.f32 %v517, %v541
        %v550 = vadd.f32 %v545, 1e-05
        %v551 = vrsqrt.pop %v550
        %v552 = vmul.f32 %v548, %v551
        %v553 = vmul.f32 %v549, %v551
        %v554 = vlaneseq
        %v555 = vshrl.u32 %v554, 7
        %v556 = vsub.s32 0, %v555
        %v557 = vrot.slane %v546, %v556
        %v558 = vmul.f32 %v552, %v557
        %v559 = vmul.f32 %v553, %v557
        %v560 = vlaneseq
        %v561 = vshrl.u32 %v560, 7
        %v562 = vsub.s32 0, %v561
        %v563 = vrot.slane %v547, %v562
        %v564 = vadd.f32 %v558, %v563
        %v565 = vadd.f32 %v559, %v563
        %v566 = vmax.f32 %v564, 0.0
        %v567 = vmax.f32 %v565, 0.0
        %v568 = vld [vmem:[#allocation7] sm:$0xff]
        %v569 = vld [vmem:[#allocation7 + $0x8] sm:$0xff]
        %v570 = vld [vmem:[#allocation7 + $0x10] sm:$0xff]
        %v571 = vld [vmem:[#allocation7 + $0x18] sm:$0xff]
        %v572 = vld [vmem:[#allocation7 + $0x20] sm:$0xff]
        %v573 = vld [vmem:[#allocation7 + $0x28] sm:$0xff]
        %v574 = vld [vmem:[#allocation7 + $0x30] sm:$0xff]
        %v575 = vld [vmem:[#allocation7 + $0x38] sm:$0xff]
        %v577 = vsel %vm520, %v566, 0
        %v580 = vsel %vm520, %v567, 0
        %582 = vmatprep.subr.mxu0 0.0
        %583 = vmatpush1.msra.mxu0 %v568
        %584 = vmatprep.subr.mxu0 0.0
        %585 = vmatpush1.msra.mxu0 %v569
        %586 = vmatprep.subr.mxu0 0.0
        %587 = vmatpush1.msra.mxu0 %v570
        %588 = vmatprep.subr.mxu0 0.0
        %589 = vmatpush1.msra.mxu0 %v571
        %590 = vmatprep.subr.mxu0 0.0
        %591 = vmatpush1.msra.mxu0 %v572
        %592 = vmatprep.subr.mxu0 0.0
        %593 = vmatpush1.msra.mxu0 %v573
        %594 = vmatprep.subr.mxu0 0.0
        %595 = vmatpush1.msra.mxu0 %v574
        %596 = vmatprep.subr.mxu0 0.0
        %597 = vmatpush1.msra.mxu0 %v575
        %598 = vmatprep.subr.mxu0 0.0
        %599 = vmatpush1.msra.mxu0 0.0
        %600 = vmatprep.subr.mxu0 0.0
        %601 = vmatpush1.msra.mxu0 0.0
        %602 = vmatprep.subr.mxu0 0.0
        %603 = vmatpush1.msra.mxu0 0.0
        %604 = vmatprep.subr.mxu0 0.0
        %605 = vmatpush1.msra.mxu0 0.0
        %606 = vmatprep.subr.mxu0 0.0
        %607 = vmatpush1.msra.mxu0 0.0
        %608 = vmatprep.subr.mxu0 0.0
        %609 = vmatpush1.msra.mxu0 0.0
        %610 = vmatprep.subr.mxu0 0.0
        %611 = vmatpush1.msra.mxu0 0.0
        %612 = vmatprep.subr.mxu0 0.0
        %613 = vmatpush1.msra.mxu0 0.0
        %614 = vmatprep.subr.mxu0 0.0
        %615 = vmatpush1.msra.mxu0 0.0
        %616 = vmatprep.subr.mxu0 0.0
        %617 = vmatpush1.msra.mxu0 0.0
        %618 = vmatprep.subr.mxu0 0.0
        %619 = vmatpush1.msra.mxu0 0.0
        %620 = vmatprep.subr.mxu0 0.0
        %621 = vmatpush1.msra.mxu0 0.0
        %622 = vmatprep.subr.mxu0 0.0
        %623 = vmatpush1.msra.mxu0 0.0
        %624 = vmatprep.subr.mxu0 0.0
        %625 = vmatpush1.msra.mxu0 0.0
        %626 = vmatprep.subr.mxu0 0.0
        %627 = vmatpush1.msra.mxu0 0.0
        %628 = vmatprep.subr.mxu0 0.0
        %629 = vmatpush1.msra.mxu0 0.0
        %630 = vmatprep.subr.mxu0 0.0
        %631 = vmatpush1.msra.mxu0 0.0
        %632 = vmatprep.subr.mxu0 0.0
        %633 = vmatpush1.msra.mxu0 0.0
        %634 = vmatprep.subr.mxu0 0.0
        %635 = vmatpush1.msra.mxu0 0.0
        %636 = vmatprep.subr.mxu0 0.0
        %637 = vmatpush1.msra.mxu0 0.0
        %638 = vmatprep.subr.mxu0 0.0
        %639 = vmatpush1.msra.mxu0 0.0
        %640 = vmatprep.subr.mxu0 0.0
        %641 = vmatpush1.msra.mxu0 0.0
        %642 = vmatprep.subr.mxu0 0.0
        %643 = vmatpush1.msra.mxu0 0.0
        %644 = vmatprep.subr.mxu0 0.0
        %645 = vmatpush1.msra.mxu0 0.0
        %646 = vmatprep.mubr.f32.mxu0 0.0
        %647 = vmatmul.mubr.f32.gmra.mrb[0].mxu0 %v577
        %v648 = vpop.f32.mrb[0].mxu0
        %v649 = vadd.f32 0.0, %v648
        %v650 = vpop.f32.mrb[0].mxu0
        %651 = vmatprep.mubr.f32.mxu0 0.0
        %652 = vmatmul.mubr.f32.gmra.mrb[0].mxu0 %v580
        %v653 = vpop.f32.mrb[0].mxu0
        %v654 = vadd.f32 0.0, %v653
        %v655 = vpop.f32.mrb[0].mxu0
        %656 = vdwg.mxu0
        %v657 = vsel %vm520, %v649, 0.0
        %v658 = vsel %vm520, %v654, 0.0
        %v659 = vadd.f32 %v657, %v658
        %v660 = vrot.slane %v659, 4
        %v661 = vadd.f32 %v659, %v660
        %v662 = vrot.slane %v661, 2
        %v663 = vadd.f32 %v661, %v662
        %v664 = vrot.slane %v663, 1
        %v665 = vadd.f32 %v663, %v664
        %v666 = vmul.f32 %v649, %v649
        %v667 = vmul.f32 %v654, %v654
        %v668 = vsel %vm520, %v666, 0.0
        %v669 = vsel %vm520, %v667, 0.0
        %v670 = vadd.f32 %v668, %v669
        %v671 = vrot.slane %v670, 4
        %v672 = vadd.f32 %v670, %v671
        %v673 = vrot.slane %v672, 2
        %v674 = vadd.f32 %v672, %v673
        %v675 = vrot.slane %v674, 1
        %v676 = vadd.f32 %v674, %v675
        %v677 = vmul.f32 %v665, 0.0625
        %v678 = vmul.f32 %v676, 0.0625
        %v679 = vmul.f32 %v677, %v677
        %v680 = vsub.f32 %v678, %v679
        %v681 = vmax.f32 %v680, 0.0
        %v682 = vld [vmem:[%s7 + $0x1] sm:$0x1]
        %v683 = vld [vmem:[%s8 + $0x1] sm:$0x1]
        %v684 = vsub.f32 %v649, %v677
        %v685 = vsub.f32 %v654, %v677
        %v686 = vadd.f32 %v681, 1e-05
        %v687 = vrsqrt.pop %v686
        %v688 = vmul.f32 %v684, %v687
        %v689 = vmul.f32 %v685, %v687
        %v690 = vlaneseq
        %v691 = vshrl.u32 %v690, 7
        %v692 = vsub.s32 0, %v691
        %v693 = vrot.slane %v682, %v692
        %v694 = vmul.f32 %v688, %v693
        %v695 = vmul.f32 %v689, %v693
        %v696 = vlaneseq
        %v697 = vshrl.u32 %v696, 7
        %v698 = vsub.s32 0, %v697
        %v699 = vrot.slane %v683, %v698
        %v700 = vadd.f32 %v694, %v699
        %v701 = vadd.f32 %v695, %v699
        %v702 = vmax.f32 %v700, 0.0
        %v703 = vmax.f32 %v701, 0.0
        %v704 = vld [vmem:[#allocation8] sm:$0xff]
        %v705 = vld [vmem:[#allocation8 + $0x8] sm:$0xff]
        %v706 = vld [vmem:[#allocation8 + $0x10] sm:$0xff]
        %v707 = vld [vmem:[#allocation8 + $0x18] sm:$0xff]
        %v708 = vld [vmem:[#allocation8 + $0x20] sm:$0xff]
        %v709 = vld [vmem:[#allocation8 + $0x28] sm:$0xff]
        %v710 = vld [vmem:[#allocation8 + $0x30] sm:$0xff]
        %v711 = vld [vmem:[#allocation8 + $0x38] sm:$0xff]
        %v713 = vsel %vm520, %v702, 0
        %v716 = vsel %vm520, %v703, 0
        %718 = vmatprep.subr.mxu0 0.0
        %719 = vmatpush1.msra.mxu0 %v704
        %720 = vmatprep.subr.mxu0 0.0
        %721 = vmatpush1.msra.mxu0 %v705
        %722 = vmatprep.subr.mxu0 0.0
        %723 = vmatpush1.msra.mxu0 %v706
        %724 = vmatprep.subr.mxu0 0.0
        %725 = vmatpush1.msra.mxu0 %v707
        %726 = vmatprep.subr.mxu0 0.0
        %727 = vmatpush1.msra.mxu0 %v708
        %728 = vmatprep.subr.mxu0 0.0
        %729 = vmatpush1.msra.mxu0 %v709
        %730 = vmatprep.subr.mxu0 0.0
        %731 = vmatpush1.msra.mxu0 %v710
        %732 = vmatprep.subr.mxu0 0.0
        %733 = vmatpush1.msra.mxu0 %v711
        %734 = vmatprep.subr.mxu0 0.0
        %735 = vmatpush1.msra.mxu0 0.0
        %736 = vmatprep.subr.mxu0 0.0
        %737 = vmatpush1.msra.mxu0 0.0
        %738 = vmatprep.subr.mxu0 0.0
        %739 = vmatpush1.msra.mxu0 0.0
        %740 = vmatprep.subr.mxu0 0.0
        %741 = vmatpush1.msra.mxu0 0.0
        %742 = vmatprep.subr.mxu0 0.0
        %743 = vmatpush1.msra.mxu0 0.0
        %744 = vmatprep.subr.mxu0 0.0
        %745 = vmatpush1.msra.mxu0 0.0
        %746 = vmatprep.subr.mxu0 0.0
        %747 = vmatpush1.msra.mxu0 0.0
        %748 = vmatprep.subr.mxu0 0.0
        %749 = vmatpush1.msra.mxu0 0.0
        %750 = vmatprep.subr.mxu0 0.0
        %751 = vmatpush1.msra.mxu0 0.0
        %752 = vmatprep.subr.mxu0 0.0
        %753 = vmatpush1.msra.mxu0 0.0
        %754 = vmatprep.subr.mxu0 0.0
        %755 = vmatpush1.msra.mxu0 0.0
        %756 = vmatprep.subr.mxu0 0.0
        %757 = vmatpush1.msra.mxu0 0.0
        %758 = vmatprep.subr.mxu0 0.0
        %759 = vmatpush1.msra.mxu0 0.0
        %760 = vmatprep.subr.mxu0 0.0
        %761 = vmatpush1.msra.mxu0 0.0
        %762 = vmatprep.subr.mxu0 0.0
        %763 = vmatpush1.msra.mxu0 0.0
        %764 = vmatprep.subr.mxu0 0.0
        %765 = vmatpush1.msra.mxu0 0.0
        %766 = vmatprep.subr.mxu0 0.0
        %767 = vmatpush1.msra.mxu0 0.0
        %768 = vmatprep.subr.mxu0 0.0
        %769 = vmatpush1.msra.mxu0 0.0
        %770 = vmatprep.subr.mxu0 0.0
        %771 = vmatpush1.msra.mxu0 0.0
        %772 = vmatprep.subr.mxu0 0.0
        %773 = vmatpush1.msra.mxu0 0.0
        %774 = vmatprep.subr.mxu0 0.0
        %775 = vmatpush1.msra.mxu0 0.0
        %776 = vmatprep.subr.mxu0 0.0
        %777 = vmatpush1.msra.mxu0 0.0
        %778 = vmatprep.subr.mxu0 0.0
        %779 = vmatpush1.msra.mxu0 0.0
        %780 = vmatprep.subr.mxu0 0.0
        %781 = vmatpush1.msra.mxu0 0.0
        %782 = vmatprep.mubr.f32.mxu0 0.0
        %783 = vmatmul.mubr.f32.gmra.mrb[0].mxu0 %v713
        %v784 = vpop.f32.mrb[0].mxu0
        %v785 = vadd.f32 0.0, %v784
        %v786 = vpop.f32.mrb[0].mxu0
        %787 = vmatprep.mubr.f32.mxu0 0.0
        %788 = vmatmul.mubr.f32.gmra.mrb[0].mxu0 %v716
        %v789 = vpop.f32.mrb[0].mxu0
        %v790 = vadd.f32 0.0, %v789
        %v791 = vpop.f32.mrb[0].mxu0
        %792 = vdwg.mxu0
        %v793 = vsel %vm520, %v785, 0.0
        %v794 = vsel %vm520, %v790, 0.0
        %v795 = vadd.f32 %v793, %v794
        %v796 = vrot.slane %v795, 4
        %v797 = vadd.f32 %v795, %v796
        %v798 = vrot.slane %v797, 2
        %v799 = vadd.f32 %v797, %v798
        %v800 = vrot.slane %v799, 1
        %v801 = vadd.f32 %v799, %v800
        %v802 = vmul.f32 %v785, %v785
        %v803 = vmul.f32 %v790, %v790
        %v804 = vsel %vm520, %v802, 0.0
        %v805 = vsel %vm520, %v803, 0.0
        %v806 = vadd.f32 %v804, %v805
        %v807 = vrot.slane %v806, 4
        %v808 = vadd.f32 %v806, %v807
        %v809 = vrot.slane %v808, 2
        %v810 = vadd.f32 %v808, %v809
        %v811 = vrot.slane %v810, 1
        %v812 = vadd.f32 %v810, %v811
        %v813 = vmul.f32 %v801, 0.0625
        %v814 = vmul.f32 %v812, 0.0625
        %v815 = vmul.f32 %v813, %v813
        %v816 = vsub.f32 %v814, %v815
        %v817 = vmax.f32 %v816, 0.0
        %v818 = vld [vmem:[%s7 + $0x2] sm:$0x1]
        %v819 = vld [vmem:[%s8 + $0x2] sm:$0x1]
        %v820 = vsub.f32 %v785, %v813
        %v821 = vsub.f32 %v790, %v813
        %v822 = vadd.f32 %v817, 1e-05
        %v823 = vrsqrt.pop %v822
        %v824 = vmul.f32 %v820, %v823
        %v825 = vmul.f32 %v821, %v823
        %v826 = vlaneseq
        %v827 = vshrl.u32 %v826, 7
        %v828 = vsub.s32 0, %v827
        %v829 = vrot.slane %v818, %v828
        %v830 = vmul.f32 %v824, %v829
        %v831 = vmul.f32 %v825, %v829
        %v832 = vlaneseq
        %v833 = vshrl.u32 %v832, 7
        %v834 = vsub.s32 0, %v833
        %v835 = vrot.slane %v819, %v834
        %v836 = vadd.f32 %v830, %v835
        %v837 = vadd.f32 %v831, %v835
        %v838 = vmax.f32 %v836, 0.0
        %v839 = vmax.f32 %v837, 0.0
        %v840 = vld [vmem:[#allocation10] sm:$0xff]
        %v841 = vld [vmem:[#allocation10 + $0x8] sm:$0xff]
        %v842 = vld [vmem:[#allocation10 + $0x10] sm:$0xff]
        %v843 = vld [vmem:[#allocation10 + $0x18] sm:$0xff]
        %v844 = vld [vmem:[#allocation10 + $0x20] sm:$0xff]
        %v845 = vld [vmem:[#allocation10 + $0x28] sm:$0xff]
        %v846 = vld [vmem:[#allocation10 + $0x30] sm:$0xff]
        %v847 = vld [vmem:[#allocation10 + $0x38] sm:$0xff]
        %v849 = vsel %vm520, %v838, 0
        %v852 = vsel %vm520, %v839, 0
        %854 = vmatprep.subr.mxu0 0.0
        %855 = vmatpush1.msra.mxu0 %v840
        %856 = vmatprep.subr.mxu0 0.0
        %857 = vmatpush1.msra.mxu0 %v841
        %858 = vmatprep.subr.mxu0 0.0
        %859 = vmatpush1.msra.mxu0 %v842
        %860 = vmatprep.subr.mxu0 0.0
        %861 = vmatpush1.msra.mxu0 %v843
        %862 = vmatprep.subr.mxu0 0.0
        %863 = vmatpush1.msra.mxu0 %v844
        %864 = vmatprep.subr.mxu0 0.0
        %865 = vmatpush1.msra.mxu0 %v845
        %866 = vmatprep.subr.mxu0 0.0
        %867 = vmatpush1.msra.mxu0 %v846
        %868 = vmatprep.subr.mxu0 0.0
        %869 = vmatpush1.msra.mxu0 %v847
        %870 = vmatprep.subr.mxu0 0.0
        %871 = vmatpush1.msra.mxu0 0.0
        %872 = vmatprep.subr.mxu0 0.0
        %873 = vmatpush1.msra.mxu0 0.0
        %874 = vmatprep.subr.mxu0 0.0
        %875 = vmatpush1.msra.mxu0 0.0
        %876 = vmatprep.subr.mxu0 0.0
        %877 = vmatpush1.msra.mxu0 0.0
        %878 = vmatprep.subr.mxu0 0.0
        %879 = vmatpush1.msra.mxu0 0.0
        %880 = vmatprep.subr.mxu0 0.0
        %881 = vmatpush1.msra.mxu0 0.0
        %882 = vmatprep.subr.mxu0 0.0
        %883 = vmatpush1.msra.mxu0 0.0
        %884 = vmatprep.subr.mxu0 0.0
        %885 = vmatpush1.msra.mxu0 0.0
        %886 = vmatprep.subr.mxu0 0.0
        %887 = vmatpush1.msra.mxu0 0.0
        %888 = vmatprep.subr.mxu0 0.0
        %889 = vmatpush1.msra.mxu0 0.0
        %890 = vmatprep.subr.mxu0 0.0
        %891 = vmatpush1.msra.mxu0 0.0
        %892 = vmatprep.subr.mxu0 0.0
        %893 = vmatpush1.msra.mxu0 0.0
        %894 = vmatprep.subr.mxu0 0.0
        %895 = vmatpush1.msra.mxu0 0.0
        %896 = vmatprep.subr.mxu0 0.0
        %897 = vmatpush1.msra.mxu0 0.0
        %898 = vmatprep.subr.mxu0 0.0
        %899 = vmatpush1.msra.mxu0 0.0
        %900 = vmatprep.subr.mxu0 0.0
        %901 = vmatpush1.msra.mxu0 0.0
        %902 = vmatprep.subr.mxu0 0.0
        %903 = vmatpush1.msra.mxu0 0.0
        %904 = vmatprep.subr.mxu0 0.0
        %905 = vmatpush1.msra.mxu0 0.0
        %906 = vmatprep.subr.mxu0 0.0
        %907 = vmatpush1.msra.mxu0 0.0
        %908 = vmatprep.subr.mxu0 0.0
        %909 = vmatpush1.msra.mxu0 0.0
        %910 = vmatprep.subr.mxu0 0.0
        %911 = vmatpush1.msra.mxu0 0.0
        %912 = vmatprep.subr.mxu0 0.0
        %913 = vmatpush1.msra.mxu0 0.0
        %914 = vmatprep.subr.mxu0 0.0
        %915 = vmatpush1.msra.mxu0 0.0
        %916 = vmatprep.subr.mxu0 0.0
        %917 = vmatpush1.msra.mxu0 0.0
        %918 = vmatprep.mubr.f32.mxu0 0.0
        %919 = vmatmul.mubr.f32.gmra.mrb[0].mxu0 %v849
        %v920 = vpop.f32.mrb[0].mxu0
        %v921 = vadd.f32 0.0, %v920
        %v922 = vpop.f32.mrb[0].mxu0
        %923 = vmatprep.mubr.f32.mxu0 0.0
        %924 = vmatmul.mubr.f32.gmra.mrb[0].mxu0 %v852
        %v925 = vpop.f32.mrb[0].mxu0
        %v926 = vadd.f32 0.0, %v925
        %v927 = vpop.f32.mrb[0].mxu0
        %928 = vdwg.mxu0
        %v929 = vsel %vm520, %v921, 0.0
        %v930 = vsel %vm520, %v926, 0.0
        %v931 = vadd.f32 %v929, %v930
        %v932 = vrot.slane %v931, 4
        %v933 = vadd.f32 %v931, %v932
        %v934 = vrot.slane %v933, 2
        %v935 = vadd.f32 %v933, %v934
        %v936 = vrot.slane %v935, 1
        %v937 = vadd.f32 %v935, %v936
        %v938 = vmul.f32 %v921, %v921
        %v939 = vmul.f32 %v926, %v926
        %v940 = vsel %vm520, %v938, 0.0
        %v941 = vsel %vm520, %v939, 0.0
        %v942 = vadd.f32 %v940, %v941
        %v943 = vrot.slane %v942, 4
        %v944 = vadd.f32 %v942, %v943
        %v945 = vrot.slane %v944, 2
        %v946 = vadd.f32 %v944, %v945
        %v947 = vrot.slane %v946, 1
        %v948 = vadd.f32 %v946, %v947
        %v949 = vmul.f32 %v937, 0.0625
        %v950 = vmul.f32 %v948, 0.0625
        %v951 = vmul.f32 %v949, %v949
        %v952 = vsub.f32 %v950, %v951
        %v953 = vmax.f32 %v952, 0.0
        %v954 = vld [vmem:[%s7 + $0x3] sm:$0x1]
        %v955 = vld [vmem:[%s8 + $0x3] sm:$0x1]
        %v956 = vsub.f32 %v921, %v949
        %v957 = vsub.f32 %v926, %v949
        %v958 = vadd.f32 %v953, 1e-05
        %v959 = vrsqrt.pop %v958
        %v960 = vmul.f32 %v956, %v959
        %v961 = vmul.f32 %v957, %v959
        %v962 = vlaneseq
        %v963 = vshrl.u32 %v962, 7
        %v964 = vsub.s32 0, %v963
        %v965 = vrot.slane %v954, %v964
        %v966 = vmul.f32 %v960, %v965
        %v967 = vmul.f32 %v961, %v965
        %v968 = vlaneseq
        %v969 = vshrl.u32 %v968, 7
        %v970 = vsub.s32 0, %v969
        %v971 = vrot.slane %v955, %v970
        %v972 = vadd.f32 %v966, %v971
        %v973 = vadd.f32 %v967, %v971
        %v974 = vmax.f32 %v972, 0.0
        %v975 = vmax.f32 %v973, 0.0
        %v976 = vld [vmem:[#allocation11] sm:$0xff]
        %v977 = vld [vmem:[#allocation11 + $0x8] sm:$0xff]
        %v978 = vld [vmem:[#allocation11 + $0x10] sm:$0xff]
        %v979 = vld [vmem:[#allocation11 + $0x18] sm:$0xff]
        %v980 = vld [vmem:[#allocation11 + $0x20] sm:$0xff]
        %v981 = vld [vmem:[#allocation11 + $0x28] sm:$0xff]
        %v982 = vld [vmem:[#allocation11 + $0x30] sm:$0xff]
        %v983 = vld [vmem:[#allocation11 + $0x38] sm:$0xff]
        %v984 = vld [vmem:[%s6] sm:$0x1]
        %v986 = vlaneseq
        %v987 = vshrl.u32 %v986, 7
        %v988 = vsub.s32 0, %v987
        %v989 = vrot.slane %v984, %v988
        %v992 = vsel %vm520, %v974, 0
        %v995 = vsel %vm520, %v975, 0
        %997 = vmatprep.subr.mxu0 0.0
        %998 = vmatpush1.msra.mxu0 %v976
        %999 = vmatprep.subr.mxu0 0.0
        %1000 = vmatpush1.msra.mxu0 %v977
        %1001 = vmatprep.subr.mxu0 0.0
        %1002 = vmatpush1.msra.mxu0 %v978
        %1003 = vmatprep.subr.mxu0 0.0
        %1004 = vmatpush1.msra.mxu0 %v979
        %1005 = vmatprep.subr.mxu0 0.0
        %1006 = vmatpush1.msra.mxu0 %v980
        %1007 = vmatprep.subr.mxu0 0.0
        %1008 = vmatpush1.msra.mxu0 %v981
        %1009 = vmatprep.subr.mxu0 0.0
        %1010 = vmatpush1.msra.mxu0 %v982
        %1011 = vmatprep.subr.mxu0 0.0
        %1012 = vmatpush1.msra.mxu0 %v983
        %1013 = vmatprep.subr.mxu0 0.0
        %1014 = vmatpush1.msra.mxu0 0.0
        %1015 = vmatprep.subr.mxu0 0.0
        %1016 = vmatpush1.msra.mxu0 0.0
        %1017 = vmatprep.subr.mxu0 0.0
        %1018 = vmatpush1.msra.mxu0 0.0
        %1019 = vmatprep.subr.mxu0 0.0
        %1020 = vmatpush1.msra.mxu0 0.0
        %1021 = vmatprep.subr.mxu0 0.0
        %1022 = vmatpush1.msra.mxu0 0.0
        %1023 = vmatprep.subr.mxu0 0.0
        %1024 = vmatpush1.msra.mxu0 0.0
        %1025 = vmatprep.subr.mxu0 0.0
        %1026 = vmatpush1.msra.mxu0 0.0
        %1027 = vmatprep.subr.mxu0 0.0
        %1028 = vmatpush1.msra.mxu0 0.0
        %1029 = vmatprep.subr.mxu0 0.0
        %1030 = vmatpush1.msra.mxu0 0.0
        %1031 = vmatprep.subr.mxu0 0.0
        %1032 = vmatpush1.msra.mxu0 0.0
        %1033 = vmatprep.subr.mxu0 0.0
        %1034 = vmatpush1.msra.mxu0 0.0
        %1035 = vmatprep.subr.mxu0 0.0
        %1036 = vmatpush1.msra.mxu0 0.0
        %1037 = vmatprep.subr.mxu0 0.0
        %1038 = vmatpush1.msra.mxu0 0.0
        %1039 = vmatprep.subr.mxu0 0.0
        %1040 = vmatpush1.msra.mxu0 0.0
        %1041 = vmatprep.subr.mxu0 0.0
        %1042 = vmatpush1.msra.mxu0 0.0
        %1043 = vmatprep.subr.mxu0 0.0
        %1044 = vmatpush1.msra.mxu0 0.0
        %1045 = vmatprep.subr.mxu0 0.0
        %1046 = vmatpush1.msra.mxu0 0.0
        %1047 = vmatprep.subr.mxu0 0.0
        %1048 = vmatpush1.msra.mxu0 0.0
        %1049 = vmatprep.subr.mxu0 0.0
        %1050 = vmatpush1.msra.mxu0 0.0
        %1051 = vmatprep.subr.mxu0 0.0
        %1052 = vmatpush1.msra.mxu0 0.0
        %1053 = vmatprep.subr.mxu0 0.0
        %1054 = vmatpush1.msra.mxu0 0.0
        %1055 = vmatprep.subr.mxu0 0.0
        %1056 = vmatpush1.msra.mxu0 0.0
        %1057 = vmatprep.subr.mxu0 0.0
        %1058 = vmatpush1.msra.mxu0 0.0
        %1059 = vmatprep.subr.mxu0 0.0
        %1060 = vmatpush1.msra.mxu0 0.0
        %1061 = vmatprep.mubr.f32.mxu0 0.0
        %1062 = vmatmul.mubr.f32.gmra.mrb[0].mxu0 %v992
        %v1063 = vpop.f32.mrb[0].mxu0
        %v1064 = vadd.f32 %v989, %v1063
        %v1065 = vpop.f32.mrb[0].mxu0
        %1066 = vmatprep.mubr.f32.mxu0 0.0
        %1067 = vmatmul.mubr.f32.gmra.mrb[0].mxu0 %v995
        %v1068 = vpop.f32.mrb[0].mxu0
        %v1069 = vadd.f32 %v989, %v1068
        %v1070 = vpop.f32.mrb[0].mxu0
        %1071 = vdwg.mxu0
        %1072 = vmax.xlane.f32.xlu0 %v1064
        %v1073 = vpop.xlane.xlu0 %1072
        %1074 = vmax.xlane.f32.xlu0 %v1069
        %v1075 = vpop.xlane.xlu0 %1074
        %v1076 = vsub.f32 %v1064, %v1073
        %v1077 = vsub.f32 %v1069, %v1075
        %v1078 = vmul.f32 %v1076, 1.442695
        %v1079 = vpow.pop %v1078
        %v1080 = vmul.f32 %v1077, 1.442695
        %v1081 = vpow.pop %v1080
        %1082 = vadd.xlane.f32.xlu0 %v1079
        %v1083 = vpop.xlane.xlu0 %1082
        %1084 = vadd.xlane.f32.xlu0 %v1081
        %v1085 = vpop.xlane.xlu0 %1084
        %v1086 = vrcp.pop %v1083
        %v1087 = vrcp.pop %v1085
        %v1088 = vmul.f32 %v1079, %v1086
        %v1089 = vmul.f32 %v1081, %v1087
        %1090 = vst [vmem:[%s423] sm:$0xff] %v1088
        %1091 = vst [vmem:[%s423 + $0x8] sm:$0xff] %v1089
        %s1092 = sand.u32 %s231, 1
        %s1093 = scalar_lea.sflag [#allocation4], %s1092
        %s1094 = sand.u32 %s231, 1
        %s1095 = smul.addr %s1094, 16
        %s1096 = scalar_lea.vmem [#allocation13], %s1095
        // Predicated region
        $region81: #{tpu_custom_call.1} parent=55 // pred_check
          %p1097 = pneg %p241
        $region82: #{tpu_custom_call.1} parent=55 // pred_check_branch
          %1099 = sbr.rel (%p1097) target = $region84
        $region83: #{tpu_custom_call.1} parent=55 // pred_region
          %s1101 = ssub.s32 256, 256
          %1102 = vsyncadd %s1093, %s1101
          %s1103 = smul.addr %s29, 2
          %s1104 = smul.addr %s1103, 128
          %s1105 = scalar_lea.hbm %s9, %s1104
          %s1106 = sshll.u32 %s1096, 4
          %s1107 = int_to_ptr.vmem [resolvable:$true] %s1106
          %1112 = dma.vmem_to_hbm [thread:$0]  %s1107, 256, %s1105, %s1093, 128, 128, 8
        $region84: #{tpu_custom_call.1} parent=55 // pred_fallthru
          _
      $region56: #{tpu_custom_call.1} parent=5 // pred_fallthru
        _
      %p1113 = scmp.le.s32.totalorder 2, %s24
      // Predicated region
      $region85: #{tpu_custom_call.1} parent=5 // pred_check
        %p1114 = pneg %p1113
      $region86: #{tpu_custom_call.1} parent=5 // pred_check_branch
        %1116 = sbr.rel (%p1114) target = $region88
      $region87: #{tpu_custom_call.1} parent=5 // pred_region
        %s1117 = ssub.s32 %s24, 2
        // Predicated region
        $region89: #{tpu_custom_call.1} parent=87 // pred_check
          %p1118 = pneg %p247
        $region90: #{tpu_custom_call.1} parent=87 // pred_check_branch
          %1120 = sbr.rel (%p1118) target = $region92
        $region91: #{tpu_custom_call.1} parent=87 // pred_region
          %s1121 = sand.u32 %s232, 1
          %s1122 = scalar_lea.sflag [#allocation4], %s1121
          %s1123 = sand.u32 %s232, 1
          %s1124 = smul.addr %s1123, 16
          %s1125 = scalar_lea.vmem [#allocation13], %s1124
          %1126 = dma.done %s1122, 256
        $region92: #{tpu_custom_call.1} parent=87 // pred_fallthru
          _
      $region88: #{tpu_custom_call.1} parent=5 // pred_fallthru
        _
    $region6: #{tpu_custom_call.1} parent=1 // loop_footer
      %s28 = sadd.s32 1, %s24
    $region7: #{tpu_custom_call.1} parent=1 // loop_footer_branch
      %23 = sbr.rel target = $region3
    $region8: #{tpu_custom_call.1} parent=1 // loop_exit
      _
    %1127 = vsyncpa [#allocation3], 1
    %s1128 = scalar_lea.sflag [#allocation3], 1
    %1129 = vsyncpa %s1128, 1
    %1130 = vsyncpa [#allocation6], 1
    %1131 = vsyncpa [#allocation9], 1
    %1132 = vsyncpa [#allocation12], 1
    %1133 = vsyncpa [#allocation4], 1
    %s1134 = scalar_lea.sflag [#allocation4], 1
    %1135 = vsyncpa %s1134, 1

</llo_original>
